<compile_context>
chip_gen: v6e
topology: v6e:2x2x1
jax: 0.10.0
libtpu: 0.0.40
codegen_flags: <defaults>
</compile_context>

<pallas_src>
import functools

import jax
import jax.numpy as jnp
from jax.experimental import pallas as pl
from jax.experimental.pallas import tpu as pltpu

DEPTH_CLASS_RANGE = [6, 8, 10, 14, 18, 23, 31, 40, 49, 59, 92, 147, 236, 655]


def _round_up(x, m):
    return ((x + m - 1) // m) * m


def _mtl_loss_kernel(logits_ref, seg_lbl_ref, dpred_ref, dtrue_ref, sums_ref,
                     *, n_aux, reverse, inv_depth_thresholds):
    """Per tile: per-pixel CE + L1, per-aux-class masked sums on the MXU.

    logits_ref : (1, C_seg, TN) f32   segmentation logits (native NCHW slab)
    seg_lbl_ref: (1, 1, TN)     i32   segmentation labels (-1 on padded pixels)
    dpred_ref  : (1, 1, TN)     f32   predicted depth
    dtrue_ref  : (1, 1, TN)     f32   true depth
    sums_ref   : (1, n_aux, 2)  f32   [:, :, 0] = per-class CE sum,
                                      [:, :, 1] = per-class L1 sum (accumulated
                                      across the pixel-chunk grid axis)
    """
    @pl.when(pl.program_id(1) == 0)
    def _():
        sums_ref[...] = jnp.zeros_like(sums_ref)

    x = logits_ref[0].astype(jnp.float32)        # (C_seg, TN)
    seg_lbl = seg_lbl_ref[0]                     # (1, TN) int32
    dpred = dpred_ref[0]                         # (1, TN)
    dtrue = dtrue_ref[0]                         # (1, TN)
    c_seg, tn = x.shape

    # One-hot of the segmentation label (used only to gather x[label]).
    seg_iota = jax.lax.broadcasted_iota(jnp.int32, (c_seg, tn), 0)
    onehot_seg = (seg_iota == seg_lbl).astype(jnp.float32)    # (C_seg, TN)

    # Cross-entropy per pixel: logsumexp(x) - x[label].
    m = jnp.max(x, axis=0, keepdims=True)                     # (1, TN)
    lse = m + jnp.log(jnp.sum(jnp.exp(x - m), axis=0, keepdims=True))
    x_at_lbl = jnp.sum(onehot_seg * x, axis=0, keepdims=True)
    ce = lse - x_at_lbl                                       # (1, TN)

    # L1 per pixel.
    l1 = jnp.abs(dpred - dtrue)                               # (1, TN)

    # Aux class index: seg label, or depth bin computed in-kernel (VPU only).
    if reverse:
        bin_idx = jnp.zeros((1, tn), jnp.int32)
        for inv_dd in inv_depth_thresholds:
            bin_idx = bin_idx + (dtrue < inv_dd).astype(jnp.int32)
        # padded pixels (seg label -1) must match no depth bin either
        aux_idx = jnp.where(seg_lbl >= 0, bin_idx, -1)
    else:
        # NOTE: assumes labels in [0, n_aux); an ignore-label (e.g. 255) would
        # silently drop those pixels from both sums (unlike torch ignore_index).
        aux_idx = seg_lbl

    aux_iota = jax.lax.broadcasted_iota(jnp.int32, (n_aux, tn), 0)
    onehot_aux = (aux_iota == aux_idx).astype(jnp.float32)    # (n_aux, TN)

    # Per-class masked sums on the MXU (VPU/XLU stay free for the softmax):
    #   (n_aux, TN) . (2, TN)^T  ->  (n_aux, 2)
    stacked = jnp.concatenate([ce, l1], axis=0)               # (2, TN)
    part = jax.lax.dot_general(
        onehot_aux, stacked,
        dimension_numbers=(((1,), (1,)), ((), ())),
        precision=jax.lax.Precision.HIGHEST,
        preferred_element_type=jnp.float32)                   # (n_aux, 2)

    sums_ref[0] = sums_ref[0] + part


def per_class_loss_sums(masks_pred, true_masks, deps_pred, true_deps,
                        n_aux, reverse, tile=8192):
    """Returns (ce_class_sum, l1_class_sum), each of shape (n_aux,).

    ce_class_sum[i] = sum over pixels with aux-class i of per-pixel CE loss
    l1_class_sum[i] = sum over pixels with aux-class i of per-pixel L1 loss
    """
    B, C, H, W = masks_pred.shape
    hw = H * W

    # Free reshapes only — no transpose, no extra HBM pass over the logits.
    logits = masks_pred.reshape(B, C, hw).astype(jnp.float32)
    seg_lbl = true_masks.reshape(B, 1, hw).astype(jnp.int32)
    dpred = deps_pred.reshape(B, 1, hw).astype(jnp.float32)
    dtrue = true_deps.reshape(B, 1, hw).astype(jnp.float32)

    # Large pixel tiles (sweepable). Per-step VMEM ≈ (C+3)*tile*4 B per buffer,
    # comfortably within scoped VMEM on v5e/v6e/v7x even double-buffered.
    tile = min(tile, _round_up(hw, 128))
    hw_pad = _round_up(hw, tile)
    pad = hw_pad - hw
    if pad:
        # Padded pixels get seg label -1 -> they match no aux class and drop
        # out of every per-class sum (their CE of log(C) never leaks).
        logits = jnp.pad(logits, ((0, 0), (0, 0), (0, pad)))
        seg_lbl = jnp.pad(seg_lbl, ((0, 0), (0, 0), (0, pad)),
                          constant_values=-1)
        dpred = jnp.pad(dpred, ((0, 0), (0, 0), (0, pad)))
        dtrue = jnp.pad(dtrue, ((0, 0), (0, 0), (0, pad)))
    n_tiles = hw_pad // tile

    kernel = functools.partial(
        _mtl_loss_kernel, n_aux=n_aux, reverse=reverse,
        inv_depth_thresholds=tuple(1.0 / d for d in DEPTH_CLASS_RANGE))

    sums = pl.pallas_call(
        kernel,
        out_shape=jax.ShapeDtypeStruct((B, n_aux, 2), jnp.float32),
        grid_spec=pltpu.PrefetchScalarGridSpec(
            num_scalar_prefetch=0,
            grid=(B, n_tiles),
            in_specs=[
                pl.BlockSpec((1, C, tile), lambda b, i: (b, 0, i)),
                pl.BlockSpec((1, 1, tile), lambda b, i: (b, 0, i)),
                pl.BlockSpec((1, 1, tile), lambda b, i: (b, 0, i)),
                pl.BlockSpec((1, 1, tile), lambda b, i: (b, 0, i)),
            ],
            out_specs=pl.BlockSpec((1, n_aux, 2), lambda b, i: (b, 0, 0)),
        ),
        compiler_params=pltpu.CompilerParams(
            # batch axis parallel (per-batch accumulator blocks -> legal, and
            # lets v7x shard it over its 2 TensorCores); pixel-chunk axis is
            # the reduction -> arbitrary.
            dimension_semantics=("parallel", "arbitrary")),
    )(logits, seg_lbl, dpred, dtrue)

    sums = jnp.sum(sums, axis=0)          # fold per-batch partials: (n_aux, 2)
    return sums[:, 0], sums[:, 1]


class MultiTaskLossVkittiPallas:
    """JAX/Pallas port of MultiTaskLossVkitti."""

    depth_class_range = DEPTH_CLASS_RANGE

    def __init__(self, n_classes, reverse=False):
        if reverse:
            self.n_classes = len(self.depth_class_range) + 1
        else:
            self.n_classes = n_classes
        self.reverse = reverse
        # deterministic parameter / state init (same as module __init__)
        self.alpha = jnp.float32(0.0002)
        self.beta1 = jnp.float32(0.9)
        self.beta2 = jnp.float32(0.999)
        self.eps = jnp.float32(1e-08)
        self.moment_vector1 = jnp.zeros(self.n_classes, jnp.float32)
        self.moment_vector2 = jnp.zeros(self.n_classes, jnp.float32)
        self.timestep = jnp.float32(1.0)
        self.loss_aux_past = None
        self.loss_main_past = None
        self.diff_aux = None
        self.loss_aux_current = None
        self.loss_main_current = None
        self.loss_aux_begin = None
        self.loss_main_begin = None
        self.pixel_num = None

    def get_aux_class_num(self):
        return self.n_classes

    def forward(self, loss_weight, masks_pred, deps_pred, true_masks, true_deps):
        B, _, H, W = masks_pred.shape
        ce_sum, l1_sum = per_class_loss_sums(
            masks_pred, true_masks, deps_pred, true_deps,
            self.n_classes, self.reverse)

        if self.reverse:
            aux_class_sum = l1_sum      # loss_aux_mat = L1, masked by depth bins
            main_class_sum = ce_sum     # loss_main_mat = CE
        else:
            aux_class_sum = ce_sum      # loss_aux_mat = CE, masked by seg one-hot
            main_class_sum = l1_sum     # loss_main_mat = L1

        self.pixel_num = true_masks.shape[1] * true_masks.shape[2]   # H * W
        self.diff_aux = aux_class_sum / self.pixel_num
        self.loss_main_current = main_class_sum

        loss_aux_per_class = loss_weight * aux_class_sum / self.pixel_num
        self.loss_aux_current = loss_aux_per_class
        loss_aux = jnp.sum(loss_aux_per_class)
        # every pixel belongs to exactly one aux class, so summing the per-class
        # sums of loss_main_mat recovers its total sum; mean = sum / (B*H*W)
        loss_main = jnp.sum(main_class_sum) / (B * H * W)

        if self.loss_aux_begin is None:
            self.loss_aux_begin = loss_aux
            self.loss_main_begin = loss_main

        loss = loss_aux / self.loss_aux_begin + loss_main / self.loss_main_begin
        return loss

    # Plain-JAX host-side state updates (O(n_classes) vector ops, not a kernel).
    def loss_weight_update(self, loss_weight):
        if self.loss_aux_past is None:
            self.loss_aux_past = self.loss_aux_current
            self.loss_main_past = self.loss_main_current
            return loss_weight
        delta_aux = (self.loss_aux_current - self.loss_aux_past) / self.loss_aux_begin
        delta_main = (self.loss_main_current - self.loss_main_past) / self.loss_main_begin
        self.loss_aux_past = self.loss_aux_current
        self.loss_main_past = self.loss_main_current
        update = (delta_main + self.eps) / (delta_aux + self.eps) * self.diff_aux
        return self.loss_weight_update_post_processing(loss_weight, update)

    def loss_weight_update_post_processing(self, loss_weight, loss_weight_update):
        self.moment_vector1 = (self.beta1 * self.moment_vector1
                               + (1.0 - self.beta1) * loss_weight_update)
        self.moment_vector2 = (self.beta2 * self.moment_vector2
                               + (1.0 - self.beta2) * loss_weight_update ** 2)
        m_hat = self.moment_vector1 / (1.0 - self.beta1 ** self.timestep)
        v_hat = self.moment_vector2 / (1.0 - self.beta2 ** self.timestep)
        self.timestep = self.timestep + 1.0
        loss_weight = loss_weight - self.alpha * m_hat / (jnp.sqrt(v_hat) + self.eps)
        return jax.nn.relu(loss_weight)


def _reference_sums(masks_pred, true_masks, deps_pred, true_deps, n_aux, reverse):
    """Pure-JAX reference for the per-class masked sums (for verification)."""
    logp = jax.nn.log_softmax(masks_pred, axis=1)                       # (B,C,H,W)
    ce = -jnp.take_along_axis(logp, true_masks[:, None], axis=1)[:, 0]  # (B,H,W)
    l1 = jnp.abs(deps_pred - true_deps)[:, 0]                           # (B,H,W)
    if reverse:
        idx = jnp.zeros_like(true_deps[:, 0], dtype=jnp.int32)
        for dd in DEPTH_CLASS_RANGE:
            idx = idx + (true_deps[:, 0] < 1.0 / dd).astype(jnp.int32)
    else:
        idx = true_masks
    onehot = jax.nn.one_hot(idx, n_aux, axis=-1, dtype=jnp.float32)     # (B,H,W,C)
    ce_sum = jnp.einsum("bhwc,bhw->c", onehot, ce)
    l1_sum = jnp.einsum("bhwc,bhw->c", onehot, l1)
    return ce_sum, l1_sum


if __name__ == "__main__":
    key = jax.random.PRNGKey(0)
    B, C, H, W = 2, 5, 16, 16
    k1, k2, k3, k4 = jax.random.split(key, 4)

    masks_pred = jax.random.normal(k1, (B, C, H, W), jnp.float32)
    deps_pred = jax.random.uniform(k2, (B, 1, H, W), jnp.float32)
    true_masks = jax.random.randint(k3, (B, H, W), 0, C, dtype=jnp.int32)
    true_deps = jax.random.uniform(k4, (B, 1, H, W), jnp.float32)
    loss_weight = jnp.ones((C,), jnp.float32)

    module = MultiTaskLossVkittiPallas(n_classes=C, reverse=False)
    loss = module.forward(loss_weight, masks_pred, deps_pred, true_masks, true_deps)
    loss = jax.block_until_ready(loss)

    # verify kernel reductions against a pure-JAX reference (non-reverse)
    ce_k, l1_k = per_class_loss_sums(masks_pred, true_masks, deps_pred, true_deps,
                                     C, reverse=False)
    ce_r, l1_r = _reference_sums(masks_pred, true_masks, deps_pred, true_deps,
                                 C, reverse=False)
    assert jnp.allclose(ce_k, ce_r, rtol=1e-5, atol=1e-4), (ce_k, ce_r)
    assert jnp.allclose(l1_k, l1_r, rtol=1e-5, atol=1e-4), (l1_k, l1_r)

    # reverse mode: depth-bin one-hot computed inside the kernel
    n_aux_rev = len(DEPTH_CLASS_RANGE) + 1
    ce_kr, l1_kr = per_class_loss_sums(masks_pred, true_masks, deps_pred,
                                       true_deps, n_aux_rev, reverse=True)
    ce_rr, l1_rr = _reference_sums(masks_pred, true_masks, deps_pred, true_deps,
                                   n_aux_rev, reverse=True)
    assert jnp.allclose(ce_kr, ce_rr, rtol=1e-5, atol=1e-4), (ce_kr, ce_rr)
    assert jnp.allclose(l1_kr, l1_rr, rtol=1e-5, atol=1e-4), (l1_kr, l1_rr)

    # first call of the stateful module: loss_aux/main_begin == current ⇒ loss == 2
    assert jnp.allclose(loss, 2.0, rtol=1e-5, atol=1e-5), loss

    print("KERNEL_OK")
</pallas_src>

<mosaic_0001>
module attributes {stable_mosaic.version = 11 : i64} {
  func.func @_mtl_loss_kernel(%arg0: i32, %arg1: i32, %arg2: memref<1x5x256xf32, #tpu.memory_space<vmem>>, %arg3: memref<1x1x256xi32, #tpu.memory_space<vmem>>, %arg4: memref<1x1x256xf32, #tpu.memory_space<vmem>>, %arg5: memref<1x1x256xf32, #tpu.memory_space<vmem>>, %arg6: memref<1x5x2xf32, #tpu.memory_space<vmem>>) attributes {dimension_semantics = [#tpu.dimension_semantics<parallel>, #tpu.dimension_semantics<arbitrary>], iteration_bounds = array<i64: 2, 1>, scalar_prefetch = 0 : i64, scratch_operands = 0 : i64, tpu.core_type = #tpu.core_type<tc>, window_params = [{transform_indices = @transform_0, window_bounds = array<i64: 1, 5, 256>}, {transform_indices = @transform_1, window_bounds = array<i64: 1, 1, 256>}, {transform_indices = @transform_2, window_bounds = array<i64: 1, 1, 256>}, {transform_indices = @transform_3, window_bounds = array<i64: 1, 1, 256>}, {transform_indices = @transform_4, window_bounds = array<i64: 1, 5, 2>}]} {
    %c0_i32 = arith.constant 0 : i32
    %0 = arith.cmpi eq, %arg1, %c0_i32 : i32
    %1 = arith.extui %0 : i1 to i32
    %c0_i32_0 = arith.constant 0 : i32
    %2 = arith.cmpi ne, %1, %c0_i32_0 : i32
    scf.if %2 {
      %cst_21 = arith.constant 0.000000e+00 : f32
      %44 = vector.broadcast %cst_21 : f32 to vector<1x5x2xf32>
      %c0_22 = arith.constant 0 : index
      %c0_23 = arith.constant 0 : index
      %c0_24 = arith.constant 0 : index
      %45 = vector.load %arg6[%c0_22, %c0_23, %c0_24] : memref<1x5x2xf32, #tpu.memory_space<vmem>>, vector<1x5x2xf32>
      tpu.vector_store %arg6[%c0_22, %c0_23, %c0_24], %44 {strides = array<i32>} : memref<1x5x2xf32, #tpu.memory_space<vmem>>, vector<1x5x2xf32>,
    } else {
    }
    %c0 = arith.constant 0 : index
    %c0_1 = arith.constant 0 : index
    %c0_2 = arith.constant 0 : index
    %3 = vector.load %arg2[%c0, %c0_1, %c0_2] : memref<1x5x256xf32, #tpu.memory_space<vmem>>, vector<1x5x256xf32>
    %4 = vector.shape_cast %3 : vector<1x5x256xf32> to vector<5x256xf32>
    %c0_3 = arith.constant 0 : index
    %c0_4 = arith.constant 0 : index
    %c0_5 = arith.constant 0 : index
    %5 = vector.load %arg3[%c0_3, %c0_4, %c0_5] : memref<1x1x256xi32, #tpu.memory_space<vmem>>, vector<1x1x256xi32>
    %6 = vector.shape_cast %5 : vector<1x1x256xi32> to vector<1x256xi32>
    %c0_6 = arith.constant 0 : index
    %c0_7 = arith.constant 0 : index
    %c0_8 = arith.constant 0 : index
    %7 = vector.load %arg4[%c0_6, %c0_7, %c0_8] : memref<1x1x256xf32, #tpu.memory_space<vmem>>, vector<1x1x256xf32>
    %8 = vector.shape_cast %7 : vector<1x1x256xf32> to vector<1x256xf32>
    %c0_9 = arith.constant 0 : index
    %c0_10 = arith.constant 0 : index
    %c0_11 = arith.constant 0 : index
    %9 = vector.load %arg5[%c0_9, %c0_10, %c0_11] : memref<1x1x256xf32, #tpu.memory_space<vmem>>, vector<1x1x256xf32>
    %10 = vector.shape_cast %9 : vector<1x1x256xf32> to vector<1x256xf32>
    %11 = tpu.iota {dimensions = array<i32: 0>} : vector<5x256xi32>
    %12 = vector.broadcast %6 : vector<1x256xi32> to vector<5x256xi32>
    %13 = arith.cmpi eq, %11, %12 : vector<5x256xi32>
    %14 = arith.extui %13 : vector<5x256xi1> to vector<5x256xi32>
    %15 = arith.sitofp %14 : vector<5x256xi32> to vector<5x256xf32>
    %cst = arith.constant dense<0xFF800000> : vector<256xf32>
    %16 = vector.multi_reduction <maximumf>, %4, %cst [0] : vector<5x256xf32> to vector<256xf32>
    %17 = vector.shape_cast %16 : vector<256xf32> to vector<1x256xf32>
    %18 = vector.broadcast %17 : vector<1x256xf32> to vector<5x256xf32>
    %19 = arith.subf %4, %18 : vector<5x256xf32>
    %20 = math.exp %19 : vector<5x256xf32>
    %cst_12 = arith.constant dense<0.000000e+00> : vector<256xf32>
    %21 = vector.multi_reduction <add>, %20, %cst_12 [0] : vector<5x256xf32> to vector<256xf32>
    %22 = vector.shape_cast %21 : vector<256xf32> to vector<1x256xf32>
    %23 = math.log %22 : vector<1x256xf32>
    %24 = arith.addf %17, %23 : vector<1x256xf32>
    %25 = arith.mulf %15, %4 : vector<5x256xf32>
    %cst_13 = arith.constant dense<0.000000e+00> : vector<256xf32>
    %26 = vector.multi_reduction <add>, %25, %cst_13 [0] : vector<5x256xf32> to vector<256xf32>
    %27 = vector.shape_cast %26 : vector<256xf32> to vector<1x256xf32>
    %28 = arith.subf %24, %27 : vector<1x256xf32>
    %29 = arith.subf %8, %10 : vector<1x256xf32>
    %30 = math.absf %29 : vector<1x256xf32>
    %31 = tpu.iota {dimensions = array<i32: 0>} : vector<5x256xi32>
    %32 = vector.broadcast %6 : vector<1x256xi32> to vector<5x256xi32>
    %33 = arith.cmpi eq, %31, %32 : vector<5x256xi32>
    %34 = arith.extui %33 : vector<5x256xi1> to vector<5x256xi32>
    %35 = arith.sitofp %34 : vector<5x256xi32> to vector<5x256xf32>
    %36 = tpu.concatenate %28, %30 in 0 : vector<1x256xf32>, vector<1x256xf32> -> vector<2x256xf32>
    %cst_14 = arith.constant dense<0.000000e+00> : vector<5x2xf32>
    %37 = tpu.matmul %35, %36, %cst_14 {dimension_numbers = #tpu.dot_dimension_numbers<[1], [1], [0], [0], [0, 0, 1, 0], [], []>, precision = #tpu.contract_precision<fp32>} : vector<5x256xf32>, vector<2x256xf32>, vector<5x2xf32> -> vector<5x2xf32>
    %c0_15 = arith.constant 0 : index
    %c0_16 = arith.constant 0 : index
    %c0_17 = arith.constant 0 : index
    %38 = vector.load %arg6[%c0_15, %c0_16, %c0_17] : memref<1x5x2xf32, #tpu.memory_space<vmem>>, vector<1x5x2xf32>
    %39 = vector.shape_cast %38 : vector<1x5x2xf32> to vector<5x2xf32>
    %40 = arith.addf %39, %37 : vector<5x2xf32>
    %c0_18 = arith.constant 0 : index
    %c0_19 = arith.constant 0 : index
    %c0_20 = arith.constant 0 : index
    %41 = vector.load %arg6[%c0_18, %c0_19, %c0_20] : memref<1x5x2xf32, #tpu.memory_space<vmem>>, vector<1x5x2xf32>
    %42 = vector.shape_cast %41 : vector<1x5x2xf32> to vector<5x2xf32>
    %43 = vector.shape_cast %40 : vector<5x2xf32> to vector<1x5x2xf32>
    tpu.vector_store %arg6[%c0_18, %c0_19, %c0_20], %43 {strides = array<i32>} : memref<1x5x2xf32, #tpu.memory_space<vmem>>, vector<1x5x2xf32>,
    return
  }
  func.func @transform_0(%arg0: i32, %arg1: i32) -> (i32, i32, i32) {
    %c0_i32 = arith.constant 0 : i32
    %c0_i32_0 = arith.constant 0 : i32
    return %arg0, %c0_i32, %arg1 : i32, i32, i32
  }
  func.func @transform_1(%arg0: i32, %arg1: i32) -> (i32, i32, i32) {
    %c0_i32 = arith.constant 0 : i32
    %c0_i32_0 = arith.constant 0 : i32
    return %arg0, %c0_i32, %arg1 : i32, i32, i32
  }
  func.func @transform_2(%arg0: i32, %arg1: i32) -> (i32, i32, i32) {
    %c0_i32 = arith.constant 0 : i32
    %c0_i32_0 = arith.constant 0 : i32
    return %arg0, %c0_i32, %arg1 : i32, i32, i32
  }
  func.func @transform_3(%arg0: i32, %arg1: i32) -> (i32, i32, i32) {
    %c0_i32 = arith.constant 0 : i32
    %c0_i32_0 = arith.constant 0 : i32
    return %arg0, %c0_i32, %arg1 : i32, i32, i32
  }
  func.func @transform_4(%arg0: i32, %arg1: i32) -> (i32, i32, i32) {
    %c0_i32 = arith.constant 0 : i32
    %c0_i32_0 = arith.constant 0 : i32
    %c0_i32_1 = arith.constant 0 : i32
    return %arg0, %c0_i32, %c0_i32_0 : i32, i32, i32
  }
}

</mosaic_0001>

<llo_original>
// kernel: tpu_custom_call.1
$region0: #{tpu_custom_call.1}
  #allocation0 [shape = 'u32[]', space=smem, size = 0x4, offset = 0x4, fixed_abs, tag = 'smem constant byte address 0x4 - core index']
  #allocation1 [shape = 'u32[144,128]{1,0:T(1,128)}', space=vmem, size = 0x12000, scoped, tag = 'internal scratch']
  %s0 = inlined_call_operand.vmem [shape: f32[2,5,256], index: 0, kind: input, shape index: {}]
  %s1 = inlined_call_operand.vmem [shape: s32[2,1,256], index: 1, kind: input, shape index: {}]
  %s2 = inlined_call_operand.vmem [shape: f32[2,1,256], index: 2, kind: input, shape index: {}]
  %s3 = inlined_call_operand.vmem [shape: f32[2,1,256], index: 3, kind: input, shape index: {}]
  %s4 = inlined_call_operand.vmem [shape: f32[2,5,2], index: 4, kind: output, shape index: {}]
  %s5 = sld [smem:[#allocation0]]
  $region53: #{tpu_custom_call.1} parent=0
    _
  %s7 = ssub.s32 1, %s5
  %s8 = scalar_select 0, %s7, %s5
  loop: start=0, step=1, limit=4
  $region2: #{tpu_custom_call.1} parent=0 // loop_pre_header
    _
  $region3: #{tpu_custom_call.1} parent=0 // loop_header
    %s10 = sphi 0, %s14
    %p11 = scmp.ge.s32.totalorder %s10, 4
    %s17 = sphi 0, %s29
    %s18 = sphi 0, %s25
    %s19 = sphi 0, %s17
    %s20 = sphi 0, %s18
    %s21 = sphi 0, %s19
    %s22 = sphi 0, %s20
    %s34 = sphi 0, %s36
    %s37 = sphi 0, %s34
    %s38 = sphi 0, %s37
    %s54 = sphi 0, %s38
    %s62 = sphi 0, %s64
    %s65 = sphi 0, %s62
    %s66 = sphi 0, %s65
    %s82 = sphi 0, %s66
    %s90 = sphi 0, %s92
    %s93 = sphi 0, %s90
    %s94 = sphi 0, %s93
    %s110 = sphi 0, %s94
    %s118 = sphi 0, %s120
    %s121 = sphi 0, %s118
    %s122 = sphi 0, %s121
    %s138 = sphi 0, %s122
    %s144 = sphi 0, %s146
    %s147 = sphi 0, %s144
    %s148 = sphi 0, %s147
    %s164 = sphi 0, %s148
  $region4: #{tpu_custom_call.1} parent=0 // loop_header_branch
    %13 = sbr.rel (%p11) target = $region8
  $region5: #{tpu_custom_call.1} parent=0 // loop_body
    %s15 = ssub.s32 %s10, 1
    %s16 = ssub.s32 %s10, 2
    %s23 = sadd.s32 1, %s18
    %p24 = scmp.ge.s32.totalorder %s23, 1
    %s25 = scalar_select %p24, 0, %s23
    %s26 = sadd.s32 1, %s17
    %s27 = scalar_select %p24, %s26, %s17
    %p28 = scmp.ge.s32.totalorder %s27, 2
    %s29 = scalar_select %p28, 0, %s27
    %s30 = ssub.s32 %s17, %s29
    %s31 = ssub.s32 %s18, %s25
    %s32 = sor.u32 %s30, %s31
    %p33 = scmp.eq.s32.totalorder %s32, 0
    %s35 = sadd.s32 %s34, 1
    %s36 = scalar_select %p33, %s34, %s35
    %p39 = pneg %p33
    %p40 = scmp.eq.s32.totalorder %s10, 1
    %p41 = por %p39, %p40
    %p42 = scmp.ne.s32.totalorder %s34, %s37
    %p43 = scmp.eq.s32.totalorder %s10, 0
    %p44 = por %p42, %p43
    %p45 = scmp.ne.s32.totalorder %s34, %s37
    %p46 = scmp.eq.s32.totalorder %s15, 1
    %p47 = por %p45, %p46
    %p48 = scmp.ne.s32.totalorder %s37, %s38
    %p49 = scmp.eq.s32.totalorder %s15, 0
    %p50 = por %p48, %p49
    %p51 = scmp.ne.s32.totalorder %s37, %s38
    %p52 = scmp.eq.s32.totalorder %s16, 1
    %p53 = por %p51, %p52
    %p55 = scmp.ne.s32.totalorder %s38, %s54
    %p56 = scmp.eq.s32.totalorder %s16, 0
    %p57 = por %p55, %p56
    %s58 = ssub.s32 %s17, %s29
    %s59 = ssub.s32 %s18, %s25
    %s60 = sor.u32 %s58, %s59
    %p61 = scmp.eq.s32.totalorder %s60, 0
    %s63 = sadd.s32 %s62, 1
    %s64 = scalar_select %p61, %s62, %s63
    %p67 = pneg %p61
    %p68 = scmp.eq.s32.totalorder %s10, 1
    %p69 = por %p67, %p68
    %p70 = scmp.ne.s32.totalorder %s62, %s65
    %p71 = scmp.eq.s32.totalorder %s10, 0
    %p72 = por %p70, %p71
    %p73 = scmp.ne.s32.totalorder %s62, %s65
    %p74 = scmp.eq.s32.totalorder %s15, 1
    %p75 = por %p73, %p74
    %p76 = scmp.ne.s32.totalorder %s65, %s66
    %p77 = scmp.eq.s32.totalorder %s15, 0
    %p78 = por %p76, %p77
    %p79 = scmp.ne.s32.totalorder %s65, %s66
    %p80 = scmp.eq.s32.totalorder %s16, 1
    %p81 = por %p79, %p80
    %p83 = scmp.ne.s32.totalorder %s66, %s82
    %p84 = scmp.eq.s32.totalorder %s16, 0
    %p85 = por %p83, %p84
    %s86 = ssub.s32 %s17, %s29
    %s87 = ssub.s32 %s18, %s25
    %s88 = sor.u32 %s86, %s87
    %p89 = scmp.eq.s32.totalorder %s88, 0
    %s91 = sadd.s32 %s90, 1
    %s92 = scalar_select %p89, %s90, %s91
    %p95 = pneg %p89
    %p96 = scmp.eq.s32.totalorder %s10, 1
    %p97 = por %p95, %p96
    %p98 = scmp.ne.s32.totalorder %s90, %s93
    %p99 = scmp.eq.s32.totalorder %s10, 0
    %p100 = por %p98, %p99
    %p101 = scmp.ne.s32.totalorder %s90, %s93
    %p102 = scmp.eq.s32.totalorder %s15, 1
    %p103 = por %p101, %p102
    %p104 = scmp.ne.s32.totalorder %s93, %s94
    %p105 = scmp.eq.s32.totalorder %s15, 0
    %p106 = por %p104, %p105
    %p107 = scmp.ne.s32.totalorder %s93, %s94
    %p108 = scmp.eq.s32.totalorder %s16, 1
    %p109 = por %p107, %p108
    %p111 = scmp.ne.s32.totalorder %s94, %s110
    %p112 = scmp.eq.s32.totalorder %s16, 0
    %p113 = por %p111, %p112
    %s114 = ssub.s32 %s17, %s29
    %s115 = ssub.s32 %s18, %s25
    %s116 = sor.u32 %s114, %s115
    %p117 = scmp.eq.s32.totalorder %s116, 0
    %s119 = sadd.s32 %s118, 1
    %s120 = scalar_select %p117, %s118, %s119
    %p123 = pneg %p117
    %p124 = scmp.eq.s32.totalorder %s10, 1
    %p125 = por %p123, %p124
    %p126 = scmp.ne.s32.totalorder %s118, %s121
    %p127 = scmp.eq.s32.totalorder %s10, 0
    %p128 = por %p126, %p127
    %p129 = scmp.ne.s32.totalorder %s118, %s121
    %p130 = scmp.eq.s32.totalorder %s15, 1
    %p131 = por %p129, %p130
    %p132 = scmp.ne.s32.totalorder %s121, %s122
    %p133 = scmp.eq.s32.totalorder %s15, 0
    %p134 = por %p132, %p133
    %p135 = scmp.ne.s32.totalorder %s121, %s122
    %p136 = scmp.eq.s32.totalorder %s16, 1
    %p137 = por %p135, %p136
    %p139 = scmp.ne.s32.totalorder %s122, %s138
    %p140 = scmp.eq.s32.totalorder %s16, 0
    %p141 = por %p139, %p140
    %s142 = ssub.s32 %s17, %s29
    %p143 = scmp.eq.s32.totalorder %s142, 0
    %s145 = sadd.s32 %s144, 1
    %s146 = scalar_select %p143, %s144, %s145
    %p149 = pneg %p143
    %p150 = scmp.eq.s32.totalorder %s10, 1
    %p151 = por %p149, %p150
    %p152 = scmp.ne.s32.totalorder %s144, %s147
    %p153 = scmp.eq.s32.totalorder %s10, 0
    %p154 = por %p152, %p153
    %p155 = scmp.ne.s32.totalorder %s144, %s147
    %p156 = scmp.eq.s32.totalorder %s15, 1
    %p157 = por %p155, %p156
    %p158 = scmp.ne.s32.totalorder %s147, %s148
    %p159 = scmp.eq.s32.totalorder %s15, 0
    %p160 = por %p158, %p159
    %p161 = scmp.ne.s32.totalorder %s147, %s148
    %p162 = scmp.eq.s32.totalorder %s16, 1
    %p163 = por %p161, %p162
    %p165 = scmp.ne.s32.totalorder %s148, %s164
    %p166 = scmp.eq.s32.totalorder %s16, 0
    %p167 = por %p165, %p166
    %p168 = scmp.le.s32.totalorder 1, %s10
    %p169 = scmp.lt.s32.totalorder %s10, 3
    %p170 = pnand %p168, %p169
    %p171 = pneg %p170
    // Predicated region
    $region9: #{tpu_custom_call.1} parent=5 // pred_check
      _
    $region10: #{tpu_custom_call.1} parent=5 // pred_check_branch
      %173 = sbr.rel (%p170) target = $region12
    $region11: #{tpu_custom_call.1} parent=5 // pred_region
      %s174 = ssub.s32 %s10, 1
    $region12: #{tpu_custom_call.1} parent=5 // pred_fallthru
      _
    %p175 = scmp.lt.s32.totalorder %s10, 2
    // Predicated region
    $region13: #{tpu_custom_call.1} parent=5 // pred_check
      %p176 = pneg %p175
    $region14: #{tpu_custom_call.1} parent=5 // pred_check_branch
      %178 = sbr.rel (%p176) target = $region16
    $region15: #{tpu_custom_call.1} parent=5 // pred_region
      // Predicated region
      $region17: #{tpu_custom_call.1} parent=15 // pred_check
        %p179 = pneg %p44
      $region18: #{tpu_custom_call.1} parent=15 // pred_check_branch
        %181 = sbr.rel (%p179) target = $region20
      $region19: #{tpu_custom_call.1} parent=15 // pred_region
        %s182 = smul.u32 2, %s18
        %p183 = scmp.lt.s32.totalorder %s17, 1
        %s184 = scalar_select %p183, %s17, 1
        %p185 = scmp.lt.s32.totalorder %s182, 1
        %s186 = scalar_select %p185, %s182, 1
        %s187 = smul.addr %s184, 2
        %s188 = sadd.s32 %s186, %s187
        %s189 = smul.addr %s188, 8
        %s190 = scalar_lea.vmem %s0, %s189
        %s191 = smul.u32 2, %s18
      $region20: #{tpu_custom_call.1} parent=15 // pred_fallthru
        _
      // Predicated region
      $region21: #{tpu_custom_call.1} parent=15 // pred_check
        %p192 = pneg %p72
      $region22: #{tpu_custom_call.1} parent=15 // pred_check_branch
        %194 = sbr.rel (%p192) target = $region24
      $region23: #{tpu_custom_call.1} parent=15 // pred_region
        %s195 = smul.u32 2, %s18
        %p196 = scmp.lt.s32.totalorder %s17, 1
        %s197 = scalar_select %p196, %s17, 1
        %p198 = scmp.lt.s32.totalorder %s195, 1
        %s199 = scalar_select %p198, %s195, 1
        %s200 = smul.addr %s197, 2
        %s201 = sadd.s32 %s199, %s200
        %s202 = scalar_lea.vmem %s1, %s201
        %s203 = smul.u32 2, %s18
      $region24: #{tpu_custom_call.1} parent=15 // pred_fallthru
        _
      // Predicated region
      $region25: #{tpu_custom_call.1} parent=15 // pred_check
        %p204 = pneg %p100
      $region26: #{tpu_custom_call.1} parent=15 // pred_check_branch
        %206 = sbr.rel (%p204) target = $region28
      $region27: #{tpu_custom_call.1} parent=15 // pred_region
        %s207 = smul.u32 2, %s18
        %p208 = scmp.lt.s32.totalorder %s17, 1
        %s209 = scalar_select %p208, %s17, 1
        %p210 = scmp.lt.s32.totalorder %s207, 1
        %s211 = scalar_select %p210, %s207, 1
        %s212 = smul.addr %s209, 2
        %s213 = sadd.s32 %s211, %s212
        %s214 = scalar_lea.vmem %s2, %s213
        %s215 = smul.u32 2, %s18
      $region28: #{tpu_custom_call.1} parent=15 // pred_fallthru
        _
      // Predicated region
      $region29: #{tpu_custom_call.1} parent=15 // pred_check
        %p216 = pneg %p128
      $region30: #{tpu_custom_call.1} parent=15 // pred_check_branch
        %218 = sbr.rel (%p216) target = $region32
      $region31: #{tpu_custom_call.1} parent=15 // pred_region
        %s219 = smul.u32 2, %s18
        %p220 = scmp.lt.s32.totalorder %s17, 1
        %s221 = scalar_select %p220, %s17, 1
        %p222 = scmp.lt.s32.totalorder %s219, 1
        %s223 = scalar_select %p222, %s219, 1
        %s224 = smul.addr %s221, 2
        %s225 = sadd.s32 %s223, %s224
        %s226 = scalar_lea.vmem %s3, %s225
        %s227 = smul.u32 2, %s18
      $region32: #{tpu_custom_call.1} parent=15 // pred_fallthru
        _
    $region16: #{tpu_custom_call.1} parent=5 // pred_fallthru
      _
    %p228 = scmp.le.s32.totalorder 1, %s10
    %p229 = scmp.lt.s32.totalorder %s10, 3
    %p230 = pnand %p228, %p229
    %p231 = pneg %p230
    // Predicated region
    $region33: #{tpu_custom_call.1} parent=5 // pred_check
      _
    $region34: #{tpu_custom_call.1} parent=5 // pred_check_branch
      %233 = sbr.rel (%p230) target = $region36
    $region35: #{tpu_custom_call.1} parent=5 // pred_region
      %s234 = ssub.s32 %s10, 1
      %s235 = smul.u32 2, %s20
      %p236 = scmp.lt.s32.totalorder %s19, 1
      %s237 = scalar_select %p236, %s19, 1
      %p238 = scmp.lt.s32.totalorder %s235, 1
      %s239 = scalar_select %p238, %s235, 1
      %s240 = smul.addr %s237, 2
      %s241 = sadd.s32 %s239, %s240
      %s242 = smul.addr %s241, 8
      %s243 = scalar_lea.vmem %s0, %s242
      %p244 = pneg %p50
      %p245 = pneg %p47
      %s246 = smul.u32 2, %s20
      %p247 = scmp.lt.s32.totalorder %s19, 1
      %s248 = scalar_select %p247, %s19, 1
      %p249 = scmp.lt.s32.totalorder %s246, 1
      %s250 = scalar_select %p249, %s246, 1
      %s251 = smul.addr %s248, 2
      %s252 = sadd.s32 %s250, %s251
      %s253 = scalar_lea.vmem %s1, %s252
      %p254 = pneg %p78
      %p255 = pneg %p75
      %s256 = smul.u32 2, %s20
      %p257 = scmp.lt.s32.totalorder %s19, 1
      %s258 = scalar_select %p257, %s19, 1
      %p259 = scmp.lt.s32.totalorder %s256, 1
      %s260 = scalar_select %p259, %s256, 1
      %s261 = smul.addr %s258, 2
      %s262 = sadd.s32 %s260, %s261
      %s263 = scalar_lea.vmem %s2, %s262
      %p264 = pneg %p106
      %p265 = pneg %p103
      %s266 = smul.u32 2, %s20
      %p267 = scmp.lt.s32.totalorder %s19, 1
      %s268 = scalar_select %p267, %s19, 1
      %p269 = scmp.lt.s32.totalorder %s266, 1
      %s270 = scalar_select %p269, %s266, 1
      %s271 = smul.addr %s268, 2
      %s272 = sadd.s32 %s270, %s271
      %s273 = scalar_lea.vmem %s3, %s272
      %p274 = pneg %p134
      %p275 = pneg %p131
      %p276 = pneg %p160
      %p277 = pneg %p157
      %p278 = scmp.lt.s32.totalorder %s19, 1
      %s279 = scalar_select %p278, %s19, 1
      %s280 = smul.addr %s279, 8
      %s281 = scalar_lea.vmem %s4, %s280
      %s282 = smul.u32 2, %s20
      %p283 = scmp.lt.s32.totalorder %s19, 1
      %s284 = scalar_select %p283, %s19, 1
      %p285 = scmp.lt.s32.totalorder %s282, 1
      %s286 = scalar_select %p285, %s282, 1
      %s287 = smul.addr %s284, 2
      %s288 = sadd.s32 %s286, %s287
      %s289 = smul.addr %s288, 8
      %s290 = scalar_lea.vmem %s0, %s289
      %s291 = smul.u32 2, %s20
      %s292 = smul.u32 2, %s20
      %p293 = scmp.lt.s32.totalorder %s19, 1
      %s294 = scalar_select %p293, %s19, 1
      %p295 = scmp.lt.s32.totalorder %s292, 1
      %s296 = scalar_select %p295, %s292, 1
      %s297 = smul.addr %s294, 2
      %s298 = sadd.s32 %s296, %s297
      %s299 = scalar_lea.vmem %s1, %s298
      %s300 = smul.u32 2, %s20
      %s301 = smul.u32 2, %s20
      %p302 = scmp.lt.s32.totalorder %s19, 1
      %s303 = scalar_select %p302, %s19, 1
      %p304 = scmp.lt.s32.totalorder %s301, 1
      %s305 = scalar_select %p304, %s301, 1
      %s306 = smul.addr %s303, 2
      %s307 = sadd.s32 %s305, %s306
      %s308 = scalar_lea.vmem %s2, %s307
      %s309 = smul.u32 2, %s20
      %s310 = smul.u32 2, %s20
      %p311 = scmp.lt.s32.totalorder %s19, 1
      %s312 = scalar_select %p311, %s19, 1
      %p313 = scmp.lt.s32.totalorder %s310, 1
      %s314 = scalar_select %p313, %s310, 1
      %s315 = smul.addr %s312, 2
      %s316 = sadd.s32 %s314, %s315
      %s317 = scalar_lea.vmem %s3, %s316
      %s318 = smul.u32 2, %s20
      %p319 = scmp.lt.s32.totalorder %s19, 1
      %s320 = scalar_select %p319, %s19, 1
      %s321 = smul.addr %s320, 8
      %s322 = scalar_lea.vmem %s4, %s321
      %p323 = scmp.eq.s32.totalorder %s20, 0
      // Predicated region
      $region37: #{tpu_custom_call.1} parent=35 // pred_check
        %p324 = pneg %p323
      $region38: #{tpu_custom_call.1} parent=35 // pred_check_branch
        %326 = sbr.rel (%p324) target = $region40
      $region39: #{tpu_custom_call.1} parent=35 // pred_region
        %vm327 = vcmask 12288
        %328 = vst.msk [vmem:[%s322] sm:$0x1f] %vm327, 0.0
      $region40: #{tpu_custom_call.1} parent=35 // pred_fallthru
        _
      %v329 = vld [vmem:[%s290] sm:$0x1f]
      %v330 = vld [vmem:[%s290 + $0x8] sm:$0x1f]
      %v331 = vld [vmem:[%s299] sm:$0x3]
      %v332 = vld [vmem:[%s308] sm:$0x3]
      %v333 = vld [vmem:[%s317] sm:$0x3]
      %v334 = vlaneseq
      %v335 = vshrl.u32 %v334, 7
      %v336 = vlaneseq
      %v337 = vshrl.u32 %v336, 7
      %v338 = vsub.s32 0, %v337
      %v339 = vrot.slane %v331, %v338
      %v340 = vlaneseq
      %v341 = vshrl.u32 %v340, 7
      %v342 = vsub.s32 1, %v341
      %v343 = vrot.slane %v331, %v342
      %vm344 = vcmp.eq.s32.totalorder %v335, %v339
      %vm345 = vcmp.eq.s32.totalorder %v335, %v343
      %v346 = vsel %vm344, 1, 0
      %v347 = vsel %vm345, 1, 0
      %v348 = vcvt.s32.f32 %v346
      %v349 = vcvt.s32.f32 %v347
      %vm350 = vcmask 1044480
      %v351 = vsel %vm350, %v329, -inf
      %v352 = vrot.slane %v351, 4
      %v353 = vmax.f32 %v351, %v352
      %v354 = vrot.slane %v353, 2
      %v355 = vmax.f32 %v353, %v354
      %v356 = vrot.slane %v355, 1
      %v357 = vmax.f32 %v355, %v356
      %v358 = vsel %vm350, %v330, -inf
      %v359 = vrot.slane %v358, 4
      %v360 = vmax.f32 %v358, %v359
      %v361 = vrot.slane %v360, 2
      %v362 = vmax.f32 %v360, %v361
      %v363 = vrot.slane %v362, 1
      %v364 = vmax.f32 %v362, %v363
      %v365 = vsub.f32 %v329, %v357
      %v366 = vsub.f32 %v330, %v364
      %v367 = vmul.f32 %v365, 1.442695
      %v368 = vpow.pop %v367
      %v369 = vmul.f32 %v366, 1.442695
      %v370 = vpow.pop %v369
      %v371 = vsel %vm350, %v368, 0.0
      %v372 = vrot.slane %v371, 4
      %v373 = vadd.f32 %v371, %v372
      %v374 = vrot.slane %v373, 2
      %v375 = vadd.f32 %v373, %v374
      %v376 = vrot.slane %v375, 1
      %v377 = vadd.f32 %v375, %v376
      %v378 = vsel %vm350, %v370, 0.0
      %v379 = vrot.slane %v378, 4
      %v380 = vadd.f32 %v378, %v379
      %v381 = vrot.slane %v380, 2
      %v382 = vadd.f32 %v380, %v381
      %v383 = vrot.slane %v382, 1
      %v384 = vadd.f32 %v382, %v383
      %v385 = vlog2.pop %v377
      %v386 = vmul.f32 %v385, 0.6931472
      %v387 = vlog2.pop %v384
      %v388 = vmul.f32 %v387, 0.6931472
      %v389 = vadd.f32 %v357, %v386
      %v390 = vadd.f32 %v364, %v388
      %v391 = vmul.f32 %v348, %v329
      %v392 = vmul.f32 %v349, %v330
      %v393 = vsel %vm350, %v391, 0.0
      %v394 = vrot.slane %v393, 4
      %v395 = vadd.f32 %v393, %v394
      %v396 = vrot.slane %v395, 2
      %v397 = vadd.f32 %v395, %v396
      %v398 = vrot.slane %v397, 1
      %v399 = vadd.f32 %v397, %v398
      %v400 = vsel %vm350, %v392, 0.0
      %v401 = vrot.slane %v400, 4
      %v402 = vadd.f32 %v400, %v401
      %v403 = vrot.slane %v402, 2
      %v404 = vadd.f32 %v402, %v403
      %v405 = vrot.slane %v404, 1
      %v406 = vadd.f32 %v404, %v405
      %v407 = vsub.f32 %v389, %v399
      %v408 = vsub.f32 %v390, %v406
      %v409 = vsub.f32 %v332, %v333
      %v410 = vand.u32 2147483647, %v409
      %v412 = vlaneseq
      %v413 = vshrl.u32 %v412, 7
      %v414 = vsub.s32 0, %v413
      %v415 = vrot.slane %v410, %v414
      %v416 = vlaneseq
      %v417 = vshrl.u32 %v416, 7
      %v418 = vsub.s32 1, %v417
      %v419 = vrot.slane %v410, %v418
      %vm422 = vcmask 1040384
      %v423 = vsel %vm422, %v407, %v415
      %v424 = vsel %vm422, %v408, %v419
      %425 = vmatprep.subr.mxu0 0.0
      %426 = vmatpush1.xpose.msra.mxu0 0.0
      %427 = vmatprep.subr.mxu0 0.0
      %428 = vmatpush1.xpose.msra.mxu0 0.0
      %429 = vmatprep.subr.mxu0 0.0
      %430 = vmatpush1.xpose.msra.mxu0 0.0
      %431 = vmatprep.subr.mxu0 0.0
      %432 = vmatpush1.xpose.msra.mxu0 0.0
      %433 = vmatprep.subr.mxu0 0.0
      %434 = vmatpush1.xpose.msra.mxu0 0.0
      %435 = vmatprep.subr.mxu0 0.0
      %436 = vmatpush1.xpose.msra.mxu0 0.0
      %437 = vmatprep.subr.mxu0 0.0
      %438 = vmatpush1.xpose.msra.mxu0 0.0
      %439 = vmatprep.subr.mxu0 0.0
      %440 = vmatpush1.xpose.msra.mxu0 0.0
      %441 = vmatprep.subr.mxu0 0.0
      %442 = vmatpush1.xpose.msra.mxu0 0.0
      %443 = vmatprep.subr.mxu0 0.0
      %444 = vmatpush1.xpose.msra.mxu0 0.0
      %445 = vmatprep.subr.mxu0 0.0
      %446 = vmatpush1.xpose.msra.mxu0 0.0
      %447 = vmatprep.subr.mxu0 0.0
      %448 = vmatpush1.xpose.msra.mxu0 0.0
      %449 = vmatprep.subr.mxu0 0.0
      %450 = vmatpush1.xpose.msra.mxu0 0.0
      %451 = vmatprep.subr.mxu0 0.0
      %452 = vmatpush1.xpose.msra.mxu0 0.0
      %453 = vmatprep.subr.mxu0 0.0
      %454 = vmatpush1.xpose.msra.mxu0 0.0
      %v455 = vand.u32 %v424, 4294901760
      %456 = vmatprep.subr.mxu0 %v455
      %v457 = vand.u32 %v423, 4294901760
      %458 = vmatpush1.xpose.msra.mxu0 %v457
      %459 = vmatprep.subr.mxu0 0.0
      %460 = vmatpush2.xpose.msra.mxu0 0.0
      %461 = vmatprep.subr.mxu0 0.0
      %462 = vmatpush2.xpose.msra.mxu0 0.0
      %463 = vmatprep.subr.mxu0 0.0
      %464 = vmatpush2.xpose.msra.mxu0 0.0
      %465 = vmatprep.subr.mxu0 0.0
      %466 = vmatpush2.xpose.msra.mxu0 0.0
      %467 = vmatprep.subr.mxu0 0.0
      %468 = vmatpush2.xpose.msra.mxu0 0.0
      %469 = vmatprep.subr.mxu0 0.0
      %470 = vmatpush2.xpose.msra.mxu0 0.0
      %471 = vmatprep.subr.mxu0 0.0
      %472 = vmatpush2.xpose.msra.mxu0 0.0
      %473 = vmatprep.subr.mxu0 0.0
      %474 = vmatpush2.xpose.msra.mxu0 0.0
      %475 = vmatprep.subr.mxu0 0.0
      %476 = vmatpush2.xpose.msra.mxu0 0.0
      %477 = vmatprep.subr.mxu0 0.0
      %478 = vmatpush2.xpose.msra.mxu0 0.0
      %479 = vmatprep.subr.mxu0 0.0
      %480 = vmatpush2.xpose.msra.mxu0 0.0
      %481 = vmatprep.subr.mxu0 0.0
      %482 = vmatpush2.xpose.msra.mxu0 0.0
      %483 = vmatprep.subr.mxu0 0.0
      %484 = vmatpush2.xpose.msra.mxu0 0.0
      %485 = vmatprep.subr.mxu0 0.0
      %486 = vmatpush2.xpose.msra.mxu0 0.0
      %487 = vmatprep.subr.mxu0 0.0
      %488 = vmatpush2.xpose.msra.mxu0 0.0
      %489 = vmatprep.subr.mxu0 0.0
      %490 = vmatpush2.xpose.msra.mxu0 0.0
      %v491 = vand.u32 %v349, 4294901760
      %v492 = vsub.f32 %v349, %v491
      %v493 = vand.u32 %v492, 4294901760
      %v494 = vsub.f32 %v492, %v493
      %v495 = vand.u32 %v494, 4294901760
      %496 = vmatprep.mubr.f32.mxu0 %v495
      %v497 = vand.u32 %v348, 4294901760
      %v498 = vsub.f32 %v348, %v497
      %v499 = vand.u32 %v498, 4294901760
      %v500 = vsub.f32 %v498, %v499
      %v501 = vand.u32 %v500, 4294901760
      %502 = vmatmul.mubr.f32.gmra.mxu0 %v501
      %v503 = vpop.f32.mrf.mxu0
      %v504 = vadd.f32 0.0, %v503
      %v505 = vpop.f32.mrf.mxu0
      %506 = vdwg.mxu0
      %507 = vmatprep.subr.mxu0 0.0
      %508 = vmatpush1.xpose.msra.mxu0 0.0
      %509 = vmatprep.subr.mxu0 0.0
      %510 = vmatpush1.xpose.msra.mxu0 0.0
      %511 = vmatprep.subr.mxu0 0.0
      %512 = vmatpush1.xpose.msra.mxu0 0.0
      %513 = vmatprep.subr.mxu0 0.0
      %514 = vmatpush1.xpose.msra.mxu0 0.0
      %515 = vmatprep.subr.mxu0 0.0
      %516 = vmatpush1.xpose.msra.mxu0 0.0
      %517 = vmatprep.subr.mxu0 0.0
      %518 = vmatpush1.xpose.msra.mxu0 0.0
      %519 = vmatprep.subr.mxu0 0.0
      %520 = vmatpush1.xpose.msra.mxu0 0.0
      %521 = vmatprep.subr.mxu0 0.0
      %522 = vmatpush1.xpose.msra.mxu0 0.0
      %523 = vmatprep.subr.mxu0 0.0
      %524 = vmatpush1.xpose.msra.mxu0 0.0
      %525 = vmatprep.subr.mxu0 0.0
      %526 = vmatpush1.xpose.msra.mxu0 0.0
      %527 = vmatprep.subr.mxu0 0.0
      %528 = vmatpush1.xpose.msra.mxu0 0.0
      %529 = vmatprep.subr.mxu0 0.0
      %530 = vmatpush1.xpose.msra.mxu0 0.0
      %531 = vmatprep.subr.mxu0 0.0
      %532 = vmatpush1.xpose.msra.mxu0 0.0
      %533 = vmatprep.subr.mxu0 0.0
      %534 = vmatpush1.xpose.msra.mxu0 0.0
      %535 = vmatprep.subr.mxu0 0.0
      %536 = vmatpush1.xpose.msra.mxu0 0.0
      %v537 = vand.u32 %v424, 4294901760
      %v538 = vsub.f32 %v424, %v537
      %v539 = vand.u32 %v538, 4294901760
      %v540 = vsub.f32 %v538, %v539
      %v541 = vand.u32 %v540, 4294901760
      %542 = vmatprep.subr.mxu0 %v541
      %v543 = vand.u32 %v423, 4294901760
      %v544 = vsub.f32 %v423, %v543
      %v545 = vand.u32 %v544, 4294901760
      %v546 = vsub.f32 %v544, %v545
      %v547 = vand.u32 %v546, 4294901760
      %548 = vmatpush1.xpose.msra.mxu0 %v547
      %549 = vmatprep.subr.mxu0 0.0
      %550 = vmatpush2.xpose.msra.mxu0 0.0
      %551 = vmatprep.subr.mxu0 0.0
      %552 = vmatpush2.xpose.msra.mxu0 0.0
      %553 = vmatprep.subr.mxu0 0.0
      %554 = vmatpush2.xpose.msra.mxu0 0.0
      %555 = vmatprep.subr.mxu0 0.0
      %556 = vmatpush2.xpose.msra.mxu0 0.0
      %557 = vmatprep.subr.mxu0 0.0
      %558 = vmatpush2.xpose.msra.mxu0 0.0
      %559 = vmatprep.subr.mxu0 0.0
      %560 = vmatpush2.xpose.msra.mxu0 0.0
      %561 = vmatprep.subr.mxu0 0.0
      %562 = vmatpush2.xpose.msra.mxu0 0.0
      %563 = vmatprep.subr.mxu0 0.0
      %564 = vmatpush2.xpose.msra.mxu0 0.0
      %565 = vmatprep.subr.mxu0 0.0
      %566 = vmatpush2.xpose.msra.mxu0 0.0
      %567 = vmatprep.subr.mxu0 0.0
      %568 = vmatpush2.xpose.msra.mxu0 0.0
      %569 = vmatprep.subr.mxu0 0.0
      %570 = vmatpush2.xpose.msra.mxu0 0.0
      %571 = vmatprep.subr.mxu0 0.0
      %572 = vmatpush2.xpose.msra.mxu0 0.0
      %573 = vmatprep.subr.mxu0 0.0
      %574 = vmatpush2.xpose.msra.mxu0 0.0
      %575 = vmatprep.subr.mxu0 0.0
      %576 = vmatpush2.xpose.msra.mxu0 0.0
      %577 = vmatprep.subr.mxu0 0.0
      %578 = vmatpush2.xpose.msra.mxu0 0.0
      %579 = vmatprep.subr.mxu0 0.0
      %580 = vmatpush2.xpose.msra.mxu0 0.0
      %v581 = vand.u32 %v349, 4294901760
      %582 = vmatprep.mubr.f32.mxu0 %v581
      %v583 = vand.u32 %v348, 4294901760
      %584 = vmatmul.mubr.f32.gmra.mxu0 %v583
      %v585 = vpop.f32.mrf.mxu0
      %v586 = vadd.f32 %v504, %v585
      %v587 = vpop.f32.mrf.mxu0
      %588 = vdwg.mxu0
      %589 = vmatprep.subr.mxu0 0.0
      %590 = vmatpush1.xpose.msra.mxu0 0.0
      %591 = vmatprep.subr.mxu0 0.0
      %592 = vmatpush1.xpose.msra.mxu0 0.0
      %593 = vmatprep.subr.mxu0 0.0
      %594 = vmatpush1.xpose.msra.mxu0 0.0
      %595 = vmatprep.subr.mxu0 0.0
      %596 = vmatpush1.xpose.msra.mxu0 0.0
      %597 = vmatprep.subr.mxu0 0.0
      %598 = vmatpush1.xpose.msra.mxu0 0.0
      %599 = vmatprep.subr.mxu0 0.0
      %600 = vmatpush1.xpose.msra.mxu0 0.0
      %601 = vmatprep.subr.mxu0 0.0
      %602 = vmatpush1.xpose.msra.mxu0 0.0
      %603 = vmatprep.subr.mxu0 0.0
      %604 = vmatpush1.xpose.msra.mxu0 0.0
      %605 = vmatprep.subr.mxu0 0.0
      %606 = vmatpush1.xpose.msra.mxu0 0.0
      %607 = vmatprep.subr.mxu0 0.0
      %608 = vmatpush1.xpose.msra.mxu0 0.0
      %609 = vmatprep.subr.mxu0 0.0
      %610 = vmatpush1.xpose.msra.mxu0 0.0
      %611 = vmatprep.subr.mxu0 0.0
      %612 = vmatpush1.xpose.msra.mxu0 0.0
      %613 = vmatprep.subr.mxu0 0.0
      %614 = vmatpush1.xpose.msra.mxu0 0.0
      %615 = vmatprep.subr.mxu0 0.0
      %616 = vmatpush1.xpose.msra.mxu0 0.0
      %617 = vmatprep.subr.mxu0 0.0
      %618 = vmatpush1.xpose.msra.mxu0 0.0
      %v619 = vand.u32 %v424, 4294901760
      %v620 = vsub.f32 %v424, %v619
      %621 = vmatprep.subr.mxu0 %v620
      %v622 = vand.u32 %v423, 4294901760
      %v623 = vsub.f32 %v423, %v622
      %624 = vmatpush1.xpose.msra.mxu0 %v623
      %625 = vmatprep.subr.mxu0 0.0
      %626 = vmatpush2.xpose.msra.mxu0 0.0
      %627 = vmatprep.subr.mxu0 0.0
      %628 = vmatpush2.xpose.msra.mxu0 0.0
      %629 = vmatprep.subr.mxu0 0.0
      %630 = vmatpush2.xpose.msra.mxu0 0.0
      %631 = vmatprep.subr.mxu0 0.0
      %632 = vmatpush2.xpose.msra.mxu0 0.0
      %633 = vmatprep.subr.mxu0 0.0
      %634 = vmatpush2.xpose.msra.mxu0 0.0
      %635 = vmatprep.subr.mxu0 0.0
      %636 = vmatpush2.xpose.msra.mxu0 0.0
      %637 = vmatprep.subr.mxu0 0.0
      %638 = vmatpush2.xpose.msra.mxu0 0.0
      %639 = vmatprep.subr.mxu0 0.0
      %640 = vmatpush2.xpose.msra.mxu0 0.0
      %641 = vmatprep.subr.mxu0 0.0
      %642 = vmatpush2.xpose.msra.mxu0 0.0
      %643 = vmatprep.subr.mxu0 0.0
      %644 = vmatpush2.xpose.msra.mxu0 0.0
      %645 = vmatprep.subr.mxu0 0.0
      %646 = vmatpush2.xpose.msra.mxu0 0.0
      %647 = vmatprep.subr.mxu0 0.0
      %648 = vmatpush2.xpose.msra.mxu0 0.0
      %649 = vmatprep.subr.mxu0 0.0
      %650 = vmatpush2.xpose.msra.mxu0 0.0
      %651 = vmatprep.subr.mxu0 0.0
      %652 = vmatpush2.xpose.msra.mxu0 0.0
      %653 = vmatprep.subr.mxu0 0.0
      %654 = vmatpush2.xpose.msra.mxu0 0.0
      %655 = vmatprep.subr.mxu0 0.0
      %656 = vmatpush2.xpose.msra.mxu0 0.0
      %v657 = vand.u32 %v349, 4294901760
      %v658 = vsub.f32 %v349, %v657
      %659 = vmatprep.mubr.f32.mxu0 %v658
      %v660 = vand.u32 %v348, 4294901760
      %v661 = vsub.f32 %v348, %v660
      %662 = vmatmul.mubr.f32.gmra.mxu0 %v661
      %v663 = vpop.f32.mrf.mxu0
      %v664 = vadd.f32 %v586, %v663
      %v665 = vpop.f32.mrf.mxu0
      %666 = vdwg.mxu0
      %667 = vmatprep.subr.mxu0 0.0
      %668 = vmatpush1.xpose.msra.mxu0 0.0
      %669 = vmatprep.subr.mxu0 0.0
      %670 = vmatpush1.xpose.msra.mxu0 0.0
      %671 = vmatprep.subr.mxu0 0.0
      %672 = vmatpush1.xpose.msra.mxu0 0.0
      %673 = vmatprep.subr.mxu0 0.0
      %674 = vmatpush1.xpose.msra.mxu0 0.0
      %675 = vmatprep.subr.mxu0 0.0
      %676 = vmatpush1.xpose.msra.mxu0 0.0
      %677 = vmatprep.subr.mxu0 0.0
      %678 = vmatpush1.xpose.msra.mxu0 0.0
      %679 = vmatprep.subr.mxu0 0.0
      %680 = vmatpush1.xpose.msra.mxu0 0.0
      %681 = vmatprep.subr.mxu0 0.0
      %682 = vmatpush1.xpose.msra.mxu0 0.0
      %683 = vmatprep.subr.mxu0 0.0
      %684 = vmatpush1.xpose.msra.mxu0 0.0
      %685 = vmatprep.subr.mxu0 0.0
      %686 = vmatpush1.xpose.msra.mxu0 0.0
      %687 = vmatprep.subr.mxu0 0.0
      %688 = vmatpush1.xpose.msra.mxu0 0.0
      %689 = vmatprep.subr.mxu0 0.0
      %690 = vmatpush1.xpose.msra.mxu0 0.0
      %691 = vmatprep.subr.mxu0 0.0
      %692 = vmatpush1.xpose.msra.mxu0 0.0
      %693 = vmatprep.subr.mxu0 0.0
      %694 = vmatpush1.xpose.msra.mxu0 0.0
      %695 = vmatprep.subr.mxu0 0.0
      %696 = vmatpush1.xpose.msra.mxu0 0.0
      %v697 = vand.u32 %v424, 4294901760
      %698 = vmatprep.subr.mxu0 %v697
      %v699 = vand.u32 %v423, 4294901760
      %700 = vmatpush1.xpose.msra.mxu0 %v699
      %701 = vmatprep.subr.mxu0 0.0
      %702 = vmatpush2.xpose.msra.mxu0 0.0
      %703 = vmatprep.subr.mxu0 0.0
      %704 = vmatpush2.xpose.msra.mxu0 0.0
      %705 = vmatprep.subr.mxu0 0.0
      %706 = vmatpush2.xpose.msra.mxu0 0.0
      %707 = vmatprep.subr.mxu0 0.0
      %708 = vmatpush2.xpose.msra.mxu0 0.0
      %709 = vmatprep.subr.mxu0 0.0
      %710 = vmatpush2.xpose.msra.mxu0 0.0
      %711 = vmatprep.subr.mxu0 0.0
      %712 = vmatpush2.xpose.msra.mxu0 0.0
      %713 = vmatprep.subr.mxu0 0.0
      %714 = vmatpush2.xpose.msra.mxu0 0.0
      %715 = vmatprep.subr.mxu0 0.0
      %716 = vmatpush2.xpose.msra.mxu0 0.0
      %717 = vmatprep.subr.mxu0 0.0
      %718 = vmatpush2.xpose.msra.mxu0 0.0
      %719 = vmatprep.subr.mxu0 0.0
      %720 = vmatpush2.xpose.msra.mxu0 0.0
      %721 = vmatprep.subr.mxu0 0.0
      %722 = vmatpush2.xpose.msra.mxu0 0.0
      %723 = vmatprep.subr.mxu0 0.0
      %724 = vmatpush2.xpose.msra.mxu0 0.0
      %725 = vmatprep.subr.mxu0 0.0
      %726 = vmatpush2.xpose.msra.mxu0 0.0
      %727 = vmatprep.subr.mxu0 0.0
      %728 = vmatpush2.xpose.msra.mxu0 0.0
      %729 = vmatprep.subr.mxu0 0.0
      %730 = vmatpush2.xpose.msra.mxu0 0.0
      %731 = vmatprep.subr.mxu0 0.0
      %732 = vmatpush2.xpose.msra.mxu0 0.0
      %v733 = vand.u32 %v349, 4294901760
      %v734 = vsub.f32 %v349, %v733
      %v735 = vand.u32 %v734, 4294901760
      %736 = vmatprep.mubr.f32.mxu0 %v735
      %v737 = vand.u32 %v348, 4294901760
      %v738 = vsub.f32 %v348, %v737
      %v739 = vand.u32 %v738, 4294901760
      %740 = vmatmul.mubr.f32.gmra.mxu0 %v739
      %v741 = vpop.f32.mrf.mxu0
      %v742 = vadd.f32 %v664, %v741
      %v743 = vpop.f32.mrf.mxu0
      %744 = vdwg.mxu0
      %745 = vmatprep.subr.mxu0 0.0
      %746 = vmatpush1.xpose.msra.mxu0 0.0
      %747 = vmatprep.subr.mxu0 0.0
      %748 = vmatpush1.xpose.msra.mxu0 0.0
      %749 = vmatprep.subr.mxu0 0.0
      %750 = vmatpush1.xpose.msra.mxu0 0.0
      %751 = vmatprep.subr.mxu0 0.0
      %752 = vmatpush1.xpose.msra.mxu0 0.0
      %753 = vmatprep.subr.mxu0 0.0
      %754 = vmatpush1.xpose.msra.mxu0 0.0
      %755 = vmatprep.subr.mxu0 0.0
      %756 = vmatpush1.xpose.msra.mxu0 0.0
      %757 = vmatprep.subr.mxu0 0.0
      %758 = vmatpush1.xpose.msra.mxu0 0.0
      %759 = vmatprep.subr.mxu0 0.0
      %760 = vmatpush1.xpose.msra.mxu0 0.0
      %761 = vmatprep.subr.mxu0 0.0
      %762 = vmatpush1.xpose.msra.mxu0 0.0
      %763 = vmatprep.subr.mxu0 0.0
      %764 = vmatpush1.xpose.msra.mxu0 0.0
      %765 = vmatprep.subr.mxu0 0.0
      %766 = vmatpush1.xpose.msra.mxu0 0.0
      %767 = vmatprep.subr.mxu0 0.0
      %768 = vmatpush1.xpose.msra.mxu0 0.0
      %769 = vmatprep.subr.mxu0 0.0
      %770 = vmatpush1.xpose.msra.mxu0 0.0
      %771 = vmatprep.subr.mxu0 0.0
      %772 = vmatpush1.xpose.msra.mxu0 0.0
      %773 = vmatprep.subr.mxu0 0.0
      %774 = vmatpush1.xpose.msra.mxu0 0.0
      %v775 = vand.u32 %v424, 4294901760
      %v776 = vsub.f32 %v424, %v775
      %v777 = vand.u32 %v776, 4294901760
      %778 = vmatprep.subr.mxu0 %v777
      %v779 = vand.u32 %v423, 4294901760
      %v780 = vsub.f32 %v423, %v779
      %v781 = vand.u32 %v780, 4294901760
      %782 = vmatpush1.xpose.msra.mxu0 %v781
      %783 = vmatprep.subr.mxu0 0.0
      %784 = vmatpush2.xpose.msra.mxu0 0.0
      %785 = vmatprep.subr.mxu0 0.0
      %786 = vmatpush2.xpose.msra.mxu0 0.0
      %787 = vmatprep.subr.mxu0 0.0
      %788 = vmatpush2.xpose.msra.mxu0 0.0
      %789 = vmatprep.subr.mxu0 0.0
      %790 = vmatpush2.xpose.msra.mxu0 0.0
      %791 = vmatprep.subr.mxu0 0.0
      %792 = vmatpush2.xpose.msra.mxu0 0.0
      %793 = vmatprep.subr.mxu0 0.0
      %794 = vmatpush2.xpose.msra.mxu0 0.0
      %795 = vmatprep.subr.mxu0 0.0
      %796 = vmatpush2.xpose.msra.mxu0 0.0
      %797 = vmatprep.subr.mxu0 0.0
      %798 = vmatpush2.xpose.msra.mxu0 0.0
      %799 = vmatprep.subr.mxu0 0.0
      %800 = vmatpush2.xpose.msra.mxu0 0.0
      %801 = vmatprep.subr.mxu0 0.0
      %802 = vmatpush2.xpose.msra.mxu0 0.0
      %803 = vmatprep.subr.mxu0 0.0
      %804 = vmatpush2.xpose.msra.mxu0 0.0
      %805 = vmatprep.subr.mxu0 0.0
      %806 = vmatpush2.xpose.msra.mxu0 0.0
      %807 = vmatprep.subr.mxu0 0.0
      %808 = vmatpush2.xpose.msra.mxu0 0.0
      %809 = vmatprep.subr.mxu0 0.0
      %810 = vmatpush2.xpose.msra.mxu0 0.0
      %811 = vmatprep.subr.mxu0 0.0
      %812 = vmatpush2.xpose.msra.mxu0 0.0
      %813 = vmatprep.subr.mxu0 0.0
      %814 = vmatpush2.xpose.msra.mxu0 0.0
      %v815 = vand.u32 %v349, 4294901760
      %816 = vmatprep.mubr.f32.mxu0 %v815
      %v817 = vand.u32 %v348, 4294901760
      %818 = vmatmul.mubr.f32.gmra.mxu0 %v817
      %v819 = vpop.f32.mrf.mxu0
      %v820 = vadd.f32 %v742, %v819
      %v821 = vpop.f32.mrf.mxu0
      %822 = vdwg.mxu0
      %823 = vmatprep.subr.mxu0 0.0
      %824 = vmatpush1.xpose.msra.mxu0 0.0
      %825 = vmatprep.subr.mxu0 0.0
      %826 = vmatpush1.xpose.msra.mxu0 0.0
      %827 = vmatprep.subr.mxu0 0.0
      %828 = vmatpush1.xpose.msra.mxu0 0.0
      %829 = vmatprep.subr.mxu0 0.0
      %830 = vmatpush1.xpose.msra.mxu0 0.0
      %831 = vmatprep.subr.mxu0 0.0
      %832 = vmatpush1.xpose.msra.mxu0 0.0
      %833 = vmatprep.subr.mxu0 0.0
      %834 = vmatpush1.xpose.msra.mxu0 0.0
      %835 = vmatprep.subr.mxu0 0.0
      %836 = vmatpush1.xpose.msra.mxu0 0.0
      %837 = vmatprep.subr.mxu0 0.0
      %838 = vmatpush1.xpose.msra.mxu0 0.0
      %839 = vmatprep.subr.mxu0 0.0
      %840 = vmatpush1.xpose.msra.mxu0 0.0
      %841 = vmatprep.subr.mxu0 0.0
      %842 = vmatpush1.xpose.msra.mxu0 0.0
      %843 = vmatprep.subr.mxu0 0.0
      %844 = vmatpush1.xpose.msra.mxu0 0.0
      %845 = vmatprep.subr.mxu0 0.0
      %846 = vmatpush1.xpose.msra.mxu0 0.0
      %847 = vmatprep.subr.mxu0 0.0
      %848 = vmatpush1.xpose.msra.mxu0 0.0
      %849 = vmatprep.subr.mxu0 0.0
      %850 = vmatpush1.xpose.msra.mxu0 0.0
      %851 = vmatprep.subr.mxu0 0.0
      %852 = vmatpush1.xpose.msra.mxu0 0.0
      %v853 = vand.u32 %v424, 4294901760
      %854 = vmatprep.subr.mxu0 %v853
      %v855 = vand.u32 %v423, 4294901760
      %856 = vmatpush1.xpose.msra.mxu0 %v855
      %857 = vmatprep.subr.mxu0 0.0
      %858 = vmatpush2.xpose.msra.mxu0 0.0
      %859 = vmatprep.subr.mxu0 0.0
      %860 = vmatpush2.xpose.msra.mxu0 0.0
      %861 = vmatprep.subr.mxu0 0.0
      %862 = vmatpush2.xpose.msra.mxu0 0.0
      %863 = vmatprep.subr.mxu0 0.0
      %864 = vmatpush2.xpose.msra.mxu0 0.0
      %865 = vmatprep.subr.mxu0 0.0
      %866 = vmatpush2.xpose.msra.mxu0 0.0
      %867 = vmatprep.subr.mxu0 0.0
      %868 = vmatpush2.xpose.msra.mxu0 0.0
      %869 = vmatprep.subr.mxu0 0.0
      %870 = vmatpush2.xpose.msra.mxu0 0.0
      %871 = vmatprep.subr.mxu0 0.0
      %872 = vmatpush2.xpose.msra.mxu0 0.0
      %873 = vmatprep.subr.mxu0 0.0
      %874 = vmatpush2.xpose.msra.mxu0 0.0
      %875 = vmatprep.subr.mxu0 0.0
      %876 = vmatpush2.xpose.msra.mxu0 0.0
      %877 = vmatprep.subr.mxu0 0.0
      %878 = vmatpush2.xpose.msra.mxu0 0.0
      %879 = vmatprep.subr.mxu0 0.0
      %880 = vmatpush2.xpose.msra.mxu0 0.0
      %881 = vmatprep.subr.mxu0 0.0
      %882 = vmatpush2.xpose.msra.mxu0 0.0
      %883 = vmatprep.subr.mxu0 0.0
      %884 = vmatpush2.xpose.msra.mxu0 0.0
      %885 = vmatprep.subr.mxu0 0.0
      %886 = vmatpush2.xpose.msra.mxu0 0.0
      %887 = vmatprep.subr.mxu0 0.0
      %888 = vmatpush2.xpose.msra.mxu0 0.0
      %v889 = vand.u32 %v349, 4294901760
      %890 = vmatprep.mubr.f32.mxu0 %v889
      %v891 = vand.u32 %v348, 4294901760
      %892 = vmatmul.mubr.f32.gmra.mxu0 %v891
      %v893 = vpop.f32.mrf.mxu0
      %v894 = vadd.f32 %v820, %v893
      %v895 = vpop.f32.mrf.mxu0
      %896 = vdwg.mxu0
      %v897 = vld [vmem:[%s322] sm:$0x1f]
      %v898 = vadd.f32 %v897, %v894
      %vm899 = vcmask 12288
      %900 = vst.msk [vmem:[%s322] sm:$0x1f] %vm899, %v898
      %p901 = scmp.lt.s32.totalorder %s19, 1
      %s902 = scalar_select %p901, %s19, 1
      %s903 = smul.addr %s902, 8
      %s904 = scalar_lea.vmem %s4, %s903
      // Predicated region
      $region41: #{tpu_custom_call.1} parent=35 // pred_check
        %p905 = pneg %p157
      $region42: #{tpu_custom_call.1} parent=35 // pred_check_branch
        %907 = sbr.rel (%p905) target = $region44
      $region43: #{tpu_custom_call.1} parent=35 // pred_region
        _
      $region44: #{tpu_custom_call.1} parent=35 // pred_fallthru
        _
    $region36: #{tpu_custom_call.1} parent=5 // pred_fallthru
      _
    %p908 = scmp.le.s32.totalorder 2, %s10
    // Predicated region
    $region45: #{tpu_custom_call.1} parent=5 // pred_check
      %p909 = pneg %p908
    $region46: #{tpu_custom_call.1} parent=5 // pred_check_branch
      %911 = sbr.rel (%p909) target = $region48
    $region47: #{tpu_custom_call.1} parent=5 // pred_region
      %s912 = ssub.s32 %s10, 2
      // Predicated region
      $region49: #{tpu_custom_call.1} parent=47 // pred_check
        %p913 = pneg %p163
      $region50: #{tpu_custom_call.1} parent=47 // pred_check_branch
        %915 = sbr.rel (%p913) target = $region52
      $region51: #{tpu_custom_call.1} parent=47 // pred_region
        %p916 = scmp.lt.s32.totalorder %s21, 1
        %s917 = scalar_select %p916, %s21, 1
        %s918 = smul.addr %s917, 8
        %s919 = scalar_lea.vmem %s4, %s918
      $region52: #{tpu_custom_call.1} parent=47 // pred_fallthru
        _
    $region48: #{tpu_custom_call.1} parent=5 // pred_fallthru
      _
  $region6: #{tpu_custom_call.1} parent=0 // loop_footer
    %s14 = sadd.s32 1, %s10
  $region7: #{tpu_custom_call.1} parent=0 // loop_footer_branch
    %9 = sbr.rel target = $region3
  $region8: #{tpu_custom_call.1} parent=0 // loop_exit
    _

</llo_original>
